<compile_context>
chip_gen: v5e
topology: v5e:2x2
jax: 0.10.0
libtpu: 0.0.40
codegen_flags: <defaults>
</compile_context>

<pallas_src>
import numpy as np
import jax
import jax.numpy as jnp
from jax import lax
from jax.experimental import pallas as pl
from jax.experimental.pallas import tpu as pltpu


def conv3x3_shuffle_swish_kernel(x_ref, w_ref, b_ref, o_ref):
    # x_ref: (M, 3K)  dy-folded, channel-packed padded rows (M = NB*H)
    # w_ref: (3K, L)  banded weight, PixelShuffle folded into column order
    # b_ref: (1, L)   bias permuted into the shuffled column order
    # o_ref: (M, L)   swish(conv + bias), lanes ordered (c, r1, 2w + r2)
    acc = jnp.dot(x_ref[...], w_ref[...], preferred_element_type=jnp.float32)
    acc = acc + b_ref[...].astype(jnp.float32)
    o_ref[...] = (acc * jax.nn.sigmoid(acc)).astype(o_ref.dtype)  # swish in f32


def build_banded_weight(w, b, W):
    """Fold conv3x3(pad=1) + PixelShuffle(2) into a (3K, L) banded matrix, once, in NumPy.

    Hoisted out of the per-call jitted path (conv weights are parameters).
      K = (W+2)*Cin, L = W*Cout; rows indexed (dy, (w+dx)*Cin + cin);
      columns indexed col = c*4W + r1*2W + 2w + r2 with co = c*4 + r1*2 + r2,
      which is exactly the PixelShuffle(2) output order for row parity r1.
    """
    w = np.asarray(w)
    b = np.asarray(b)
    Cout, Cin, KH, KW = w.shape
    assert (KH, KW) == (3, 3) and Cout % 4 == 0
    K = (W + 2) * Cin
    L = W * Cout

    def col_of(w_idx, co_idx):
        return ((co_idx // 4) * (4 * W) + ((co_idx // 2) % 2) * (2 * W)
                + 2 * w_idx + (co_idx % 2))

    dy_i, dx_i, ci_i, w_i, co_i = np.meshgrid(
        np.arange(3), np.arange(3), np.arange(Cin), np.arange(W), np.arange(Cout),
        indexing="ij")
    row_i = (w_i + dx_i) * Cin + ci_i
    col_i = col_of(w_i, co_i)
    w_t = np.transpose(w, (2, 3, 1, 0))                       # (kh, kw, Cin, Cout)
    w_big = np.zeros((3, K, L), dtype=w.dtype)
    w_big[dy_i, row_i, col_i] = w_t[dy_i, dx_i, ci_i, co_i]
    w_big3 = np.ascontiguousarray(w_big.reshape(3 * K, L))    # dy folded into contraction

    b_cols = np.zeros((1, L), dtype=b.dtype)
    w0_i, co0_i = np.meshgrid(np.arange(W), np.arange(Cout), indexing="ij")
    b_cols[0, col_of(w0_i, co0_i)] = np.broadcast_to(b[None, :], (W, Cout))
    return jnp.asarray(w_big3), jnp.asarray(b_cols)


def _images_per_step(N, H, target_m=256):
    """Largest divisor NB of N with NB*H <= target_m (MXU rows), capped at N//2 when
    N >= 2 so the parallel grid keeps >= 2 steps (both v7x TensorCores busy)."""
    cap = max(1, target_m // max(H, 1))
    if N >= 2:
        cap = min(cap, N // 2)
    cap = max(cap, 1)
    nb = max(d for d in range(1, N + 1) if N % d == 0 and d <= cap)
    if (nb * H) % 8 != 0 and nb != N:
        nb = N  # fall back to one full-array block (exempt from the (8,128) rule)
    return nb


@jax.jit
def upsample_block(x_nchw, w_big3, b_cols):
    """Forward of upsampleBlock: swish(PixelShuffle2(Conv2d3x3_pad1(x))).

    x_nchw: (N, Cin, H, W) f32
    w_big3: (3*(W+2)*Cin, W*Cout)  prebuilt banded weight (build_banded_weight)
    b_cols: (1, W*Cout)            prebuilt permuted bias
    returns (N, Cout // 4, 2H, 2W) f32
    """
    N, Cin, H, W = x_nchw.shape
    threeK, L = w_big3.shape
    K = threeK // 3
    assert K == (W + 2) * Cin
    Cout = L // W
    C = Cout // 4

    # ---- pack input: NCHW -> padded channel-packed rows, dy folded into lanes ----
    x_nhwc = jnp.transpose(x_nchw, (0, 2, 3, 1))
    x_pad = jnp.pad(x_nhwc, ((0, 0), (1, 1), (1, 1), (0, 0)))
    x_rows = x_pad.reshape(N, H + 2, K)
    x3 = jnp.concatenate(
        [x_rows[:, 0:H], x_rows[:, 1:1 + H], x_rows[:, 2:2 + H]], axis=-1)
    x3 = x3.reshape(N * H, threeK)                     # contiguous 2-D slab

    nb = _images_per_step(N, H)
    m = nb * H                                         # MXU rows per grid step
    grid = (N // nb,)

    act = pl.pallas_call(
        conv3x3_shuffle_swish_kernel,
        out_shape=jax.ShapeDtypeStruct((N * H, L), x_nchw.dtype),
        grid=grid,
        in_specs=[
            pl.BlockSpec((m, threeK), lambda n: (n, 0)),
            pl.BlockSpec((threeK, L), lambda n: (0, 0)),   # resident weight slab
            pl.BlockSpec((1, L), lambda n: (0, 0)),
        ],
        out_specs=pl.BlockSpec((m, L), lambda n: (n, 0)),
        compiler_params=pltpu.CompilerParams(
            dimension_semantics=("parallel",)),
    )(x3, w_big3, b_cols)

    # Lanes are already (c, r1, 2w + r2): one leading-axis transpose gives NCHW.
    # Consumers that accept the shuffled channels-last slab can use `act` directly.
    y = act.reshape(N, H, C, 2, 2 * W)
    y = jnp.transpose(y, (0, 2, 1, 3, 4))              # (N, C, H, r1, 2W)
    return y.reshape(N, C, 2 * H, 2 * W)


def _reference(x_nchw, w, b):
    """Pure-JAX reference matching PyTorch semantics (silent validation)."""
    conv = lax.conv_general_dilated(
        x_nchw, w, window_strides=(1, 1), padding=((1, 1), (1, 1)),
        dimension_numbers=("NCHW", "OIHW", "NCHW"))
    conv = conv + b.reshape(1, -1, 1, 1)
    N, Cout, H, W = conv.shape
    C = Cout // 4
    ps = conv.reshape(N, C, 2, 2, H, W).transpose(0, 1, 4, 2, 5, 3)
    ps = ps.reshape(N, C, 2 * H, 2 * W)
    return ps * jax.nn.sigmoid(ps)


if __name__ == "__main__":
    key = jax.random.PRNGKey(0)
    k_x, k_w, k_b = jax.random.split(key, 3)

    # Small shapes consistent with the module: in_channels=4, out_channels=16
    # (out_channels must be divisible by 4 for PixelShuffle(2)).
    N, Cin, H, W = 2, 4, 16, 16
    Cout = 16

    x = jax.random.normal(k_x, (N, Cin, H, W), dtype=jnp.float32)
    fan_in = Cin * 3 * 3
    w = jax.random.normal(k_w, (Cout, Cin, 3, 3), dtype=jnp.float32) / jnp.sqrt(fan_in)
    b = jax.random.normal(k_b, (Cout,), dtype=jnp.float32) * 0.01

    # One-time (init-time) weight preparation — not in the per-call jitted path.
    w_big3, b_cols = build_banded_weight(np.asarray(w), np.asarray(b), W)

    out = jax.block_until_ready(upsample_block(x, w_big3, b_cols))

    ref = _reference(x, w, b)
    assert out.shape == (N, Cout // 4, 2 * H, 2 * W)
    assert jnp.allclose(out, ref, atol=1e-4, rtol=1e-4)

    print("KERNEL_OK")
</pallas_src>

<mosaic_0001>
module attributes {stable_mosaic.version = 11 : i64} {
  func.func @conv3x3_shuffle_swish_kernel(%arg0: i32, %arg1: memref<16x216xf32, #tpu.memory_space<vmem>>, %arg2: memref<216x256xf32, #tpu.memory_space<vmem>>, %arg3: memref<1x256xf32, #tpu.memory_space<vmem>>, %arg4: memref<16x256xf32, #tpu.memory_space<vmem>>) attributes {dimension_semantics = [#tpu.dimension_semantics<parallel>], iteration_bounds = array<i64: 2>, scalar_prefetch = 0 : i64, scratch_operands = 0 : i64, tpu.core_type = #tpu.core_type<tc>, window_params = [{transform_indices = @transform_0, window_bounds = array<i64: 16, 216>}, {pipeline_mode = #tpu.pipeline_mode<synchronous>, transform_indices = @transform_1, window_bounds = array<i64: 216, 256>}, {pipeline_mode = #tpu.pipeline_mode<synchronous>, transform_indices = @transform_2, window_bounds = array<i64: 1, 256>}, {transform_indices = @transform_3, window_bounds = array<i64: 16, 256>}]} {
    %c0 = arith.constant 0 : index
    %c0_0 = arith.constant 0 : index
    %0 = vector.load %arg1[%c0, %c0_0] : memref<16x216xf32, #tpu.memory_space<vmem>>, vector<16x216xf32>
    %c0_1 = arith.constant 0 : index
    %c0_2 = arith.constant 0 : index
    %1 = vector.load %arg2[%c0_1, %c0_2] : memref<216x256xf32, #tpu.memory_space<vmem>>, vector<216x256xf32>
    %cst = arith.constant dense<0.000000e+00> : vector<16x256xf32>
    %2 = tpu.matmul %0, %1, %cst {dimension_numbers = #tpu.dot_dimension_numbers<[1], [0], [0], [1], [0, 0, 1, 1], [], []>} : vector<16x216xf32>, vector<216x256xf32>, vector<16x256xf32> -> vector<16x256xf32>
    %c0_3 = arith.constant 0 : index
    %c0_4 = arith.constant 0 : index
    %3 = vector.load %arg3[%c0_3, %c0_4] : memref<1x256xf32, #tpu.memory_space<vmem>>, vector<1x256xf32>
    %4 = vector.broadcast %3 : vector<1x256xf32> to vector<16x256xf32>
    %5 = arith.addf %2, %4 : vector<16x256xf32>
    %6 = arith.negf %5 : vector<16x256xf32>
    %7 = math.exp %6 : vector<16x256xf32>
    %cst_5 = arith.constant 1.000000e+00 : f32
    %8 = vector.broadcast %cst_5 : f32 to vector<16x256xf32>
    %9 = arith.addf %8, %7 : vector<16x256xf32>
    %10 = arith.divf %8, %9 : vector<16x256xf32>
    %11 = arith.mulf %5, %10 : vector<16x256xf32>
    %c0_6 = arith.constant 0 : index
    %c0_7 = arith.constant 0 : index
    %12 = vector.load %arg4[%c0_6, %c0_7] : memref<16x256xf32, #tpu.memory_space<vmem>>, vector<16x256xf32>
    tpu.vector_store %arg4[%c0_6, %c0_7], %11 {strides = array<i32>} : memref<16x256xf32, #tpu.memory_space<vmem>>, vector<16x256xf32>,
    return
  }
  func.func @transform_0(%arg0: i32) -> (i32, i32) {
    %c0_i32 = arith.constant 0 : i32
    %c0_i32_0 = arith.constant 0 : i32
    return %arg0, %c0_i32 : i32, i32
  }
  func.func @transform_1(%arg0: i32) -> (i32, i32) {
    %c0_i32 = arith.constant 0 : i32
    %c0_i32_0 = arith.constant 0 : i32
    %c0_i32_1 = arith.constant 0 : i32
    return %c0_i32, %c0_i32_0 : i32, i32
  }
  func.func @transform_2(%arg0: i32) -> (i32, i32) {
    %c0_i32 = arith.constant 0 : i32
    %c0_i32_0 = arith.constant 0 : i32
    %c0_i32_1 = arith.constant 0 : i32
    return %c0_i32, %c0_i32_0 : i32, i32
  }
  func.func @transform_3(%arg0: i32) -> (i32, i32) {
    %c0_i32 = arith.constant 0 : i32
    %c0_i32_0 = arith.constant 0 : i32
    return %arg0, %c0_i32 : i32, i32
  }
}

</mosaic_0001>

<llo_original>
// kernel: upsample_block.1
$region0: #{upsample_block.1}
  #allocation0 [shape = 'u32[]', space=smem, size = 0x4, offset = 0x4, fixed_abs, tag = 'smem constant byte address 0x4 - core index']
  #allocation1 [shape = 'u32[72,128]{1,0:T(1,128)}', space=vmem, size = 0x9000, scoped, tag = 'internal scratch']
  %s0 = inlined_call_operand.vmem [shape: f32[32,216], index: 0, kind: input, shape index: {}]
  %s1 = inlined_call_operand.vmem [shape: f32[216,256], index: 1, kind: input, shape index: {}]
  %s2 = inlined_call_operand.vmem [shape: f32[1,256], index: 2, kind: input, shape index: {}]
  %s3 = inlined_call_operand.vmem [shape: f32[32,256], index: 3, kind: output, shape index: {}]
  %s4 = sld [smem:[#allocation0]]
  $region45: #{upsample_block.1} parent=0
    _
  %s6 = ssub.s32 1, %s4
  %s7 = scalar_select 0, %s6, %s4
  loop: start=0, step=1, limit=4
  $region2: #{upsample_block.1} parent=0 // loop_pre_header
    _
  $region3: #{upsample_block.1} parent=0 // loop_header
    %s9 = sphi 0, %s13
    %p10 = scmp.ge.s32.totalorder %s9, 4
    %s19 = sphi 0, %s21
    %s22 = sphi 0, %s19
    %s23 = sphi 0, %s22
    %s39 = sphi 0, %s23
    %s43 = sphi 0, %s43
    %s45 = sphi 0, %s43
    %s46 = sphi 0, %s45
    %s60 = sphi 0, %s46
    %s64 = sphi 0, %s64
    %s66 = sphi 0, %s64
    %s67 = sphi 0, %s66
    %s81 = sphi 0, %s67
    %s87 = sphi 0, %s89
    %s90 = sphi 0, %s87
    %s91 = sphi 0, %s90
    %s107 = sphi 0, %s91
  $region4: #{upsample_block.1} parent=0 // loop_header_branch
    %12 = sbr.rel (%p10) target = $region8
  $region5: #{upsample_block.1} parent=0 // loop_body
    %s14 = ssub.s32 %s9, 1
    %s15 = ssub.s32 %s9, 2
    %s16 = sadd.s32 %s9, 1
    %s17 = ssub.s32 %s9, %s16
    %p18 = scmp.eq.s32.totalorder %s17, 0
    %s20 = sadd.s32 %s19, 1
    %s21 = scalar_select %p18, %s19, %s20
    %p24 = pneg %p18
    %p25 = scmp.eq.s32.totalorder %s9, 1
    %p26 = por %p24, %p25
    %p27 = scmp.ne.s32.totalorder %s19, %s22
    %p28 = scmp.eq.s32.totalorder %s9, 0
    %p29 = por %p27, %p28
    %p30 = scmp.ne.s32.totalorder %s19, %s22
    %p31 = scmp.eq.s32.totalorder %s14, 1
    %p32 = por %p30, %p31
    %p33 = scmp.ne.s32.totalorder %s22, %s23
    %p34 = scmp.eq.s32.totalorder %s14, 0
    %p35 = por %p33, %p34
    %p36 = scmp.ne.s32.totalorder %s22, %s23
    %p37 = scmp.eq.s32.totalorder %s15, 1
    %p38 = por %p36, %p37
    %p40 = scmp.ne.s32.totalorder %s23, %s39
    %p41 = scmp.eq.s32.totalorder %s15, 0
    %p42 = por %p40, %p41
    %s44 = sadd.s32 %s43, 1
    %p47 = scmp.eq.s32.totalorder %s9, 1
    %p48 = scmp.ne.s32.totalorder %s43, %s45
    %p49 = scmp.eq.s32.totalorder %s9, 0
    %p50 = por %p48, %p49
    %p51 = scmp.ne.s32.totalorder %s43, %s45
    %p52 = scmp.eq.s32.totalorder %s14, 1
    %p53 = por %p51, %p52
    %p54 = scmp.ne.s32.totalorder %s45, %s46
    %p55 = scmp.eq.s32.totalorder %s14, 0
    %p56 = por %p54, %p55
    %p57 = scmp.ne.s32.totalorder %s45, %s46
    %p58 = scmp.eq.s32.totalorder %s15, 1
    %p59 = por %p57, %p58
    %p61 = scmp.ne.s32.totalorder %s46, %s60
    %p62 = scmp.eq.s32.totalorder %s15, 0
    %p63 = por %p61, %p62
    %s65 = sadd.s32 %s64, 1
    %p68 = scmp.eq.s32.totalorder %s9, 1
    %p69 = scmp.ne.s32.totalorder %s64, %s66
    %p70 = scmp.eq.s32.totalorder %s9, 0
    %p71 = por %p69, %p70
    %p72 = scmp.ne.s32.totalorder %s64, %s66
    %p73 = scmp.eq.s32.totalorder %s14, 1
    %p74 = por %p72, %p73
    %p75 = scmp.ne.s32.totalorder %s66, %s67
    %p76 = scmp.eq.s32.totalorder %s14, 0
    %p77 = por %p75, %p76
    %p78 = scmp.ne.s32.totalorder %s66, %s67
    %p79 = scmp.eq.s32.totalorder %s15, 1
    %p80 = por %p78, %p79
    %p82 = scmp.ne.s32.totalorder %s67, %s81
    %p83 = scmp.eq.s32.totalorder %s15, 0
    %p84 = por %p82, %p83
    %s85 = ssub.s32 %s9, %s16
    %p86 = scmp.eq.s32.totalorder %s85, 0
    %s88 = sadd.s32 %s87, 1
    %s89 = scalar_select %p86, %s87, %s88
    %p92 = pneg %p86
    %p93 = scmp.eq.s32.totalorder %s9, 1
    %p94 = por %p92, %p93
    %p95 = scmp.ne.s32.totalorder %s87, %s90
    %p96 = scmp.eq.s32.totalorder %s9, 0
    %p97 = por %p95, %p96
    %p98 = scmp.ne.s32.totalorder %s87, %s90
    %p99 = scmp.eq.s32.totalorder %s14, 1
    %p100 = por %p98, %p99
    %p101 = scmp.ne.s32.totalorder %s90, %s91
    %p102 = scmp.eq.s32.totalorder %s14, 0
    %p103 = por %p101, %p102
    %p104 = scmp.ne.s32.totalorder %s90, %s91
    %p105 = scmp.eq.s32.totalorder %s15, 1
    %p106 = por %p104, %p105
    %p108 = scmp.ne.s32.totalorder %s91, %s107
    %p109 = scmp.eq.s32.totalorder %s15, 0
    %p110 = por %p108, %p109
    %p111 = scmp.le.s32.totalorder 1, %s9
    %p112 = scmp.lt.s32.totalorder %s9, 3
    %p113 = pnand %p111, %p112
    %p114 = pneg %p113
    // Predicated region
    $region9: #{upsample_block.1} parent=5 // pred_check
      _
    $region10: #{upsample_block.1} parent=5 // pred_check_branch
      %116 = sbr.rel (%p113) target = $region12
    $region11: #{upsample_block.1} parent=5 // pred_region
      %s117 = ssub.s32 %s9, 1
      // Predicated region
      $region13: #{upsample_block.1} parent=11 // pred_check
        %p118 = pneg %p56
      $region14: #{upsample_block.1} parent=11 // pred_check_branch
        %120 = sbr.rel (%p118) target = $region16
      $region15: #{upsample_block.1} parent=11 // pred_region
        _
      $region16: #{upsample_block.1} parent=11 // pred_fallthru
        _
      // Predicated region
      $region17: #{upsample_block.1} parent=11 // pred_check
        %p121 = pneg %p77
      $region18: #{upsample_block.1} parent=11 // pred_check_branch
        %123 = sbr.rel (%p121) target = $region20
      $region19: #{upsample_block.1} parent=11 // pred_region
        _
      $region20: #{upsample_block.1} parent=11 // pred_fallthru
        _
    $region12: #{upsample_block.1} parent=5 // pred_fallthru
      _
    %p124 = scmp.lt.s32.totalorder %s9, 2
    // Predicated region
    $region21: #{upsample_block.1} parent=5 // pred_check
      %p125 = pneg %p124
    $region22: #{upsample_block.1} parent=5 // pred_check_branch
      %127 = sbr.rel (%p125) target = $region24
    $region23: #{upsample_block.1} parent=5 // pred_region
      // Predicated region
      $region25: #{upsample_block.1} parent=23 // pred_check
        %p128 = pneg %p29
      $region26: #{upsample_block.1} parent=23 // pred_check_branch
        %130 = sbr.rel (%p128) target = $region28
      $region27: #{upsample_block.1} parent=23 // pred_region
        %s131 = smul.u32 2, %s9
        %p132 = scmp.lt.s32.totalorder %s131, 3
        %s133 = scalar_select %p132, %s131, 3
        %s134 = smul.addr %s133, 2
        %s135 = smul.addr %s134, 8
        %s136 = scalar_lea.vmem %s0, %s135
        %s137 = smul.u32 2, %s9
      $region28: #{upsample_block.1} parent=23 // pred_fallthru
        _
    $region24: #{upsample_block.1} parent=5 // pred_fallthru
      _
    %p138 = scmp.le.s32.totalorder 1, %s9
    %p139 = scmp.lt.s32.totalorder %s9, 3
    %p140 = pnand %p138, %p139
    %p141 = pneg %p140
    // Predicated region
    $region29: #{upsample_block.1} parent=5 // pred_check
      _
    $region30: #{upsample_block.1} parent=5 // pred_check_branch
      %143 = sbr.rel (%p140) target = $region32
    $region31: #{upsample_block.1} parent=5 // pred_region
      %s144 = ssub.s32 %s9, 1
      %s145 = smul.u32 2, %s14
      %p146 = scmp.lt.s32.totalorder %s145, 3
      %s147 = scalar_select %p146, %s145, 3
      %s148 = smul.addr %s147, 2
      %s149 = smul.addr %s148, 8
      %s150 = scalar_lea.vmem %s0, %s149
      %p151 = pneg %p35
      %p152 = pneg %p32
      %p153 = pneg %p56
      %p154 = pneg %p53
      %p155 = pneg %p77
      %p156 = pneg %p74
      %p157 = pneg %p103
      %p158 = pneg %p100
      %s159 = smul.u32 2, %s14
      %p160 = scmp.lt.s32.totalorder %s159, 3
      %s161 = scalar_select %p160, %s159, 3
      %s162 = smul.addr %s161, 2
      %s163 = smul.addr %s162, 8
      %s164 = scalar_lea.vmem %s3, %s163
      %s165 = smul.u32 2, %s14
      %p166 = scmp.lt.s32.totalorder %s165, 3
      %s167 = scalar_select %p166, %s165, 3
      %s168 = smul.addr %s167, 2
      %s169 = smul.addr %s168, 8
      %s170 = scalar_lea.vmem %s0, %s169
      %s171 = smul.u32 2, %s14
      %s172 = smul.u32 2, %s14
      %p173 = scmp.lt.s32.totalorder %s172, 3
      %s174 = scalar_select %p173, %s172, 3
      %s175 = smul.addr %s174, 2
      %s176 = smul.addr %s175, 8
      %s177 = scalar_lea.vmem %s3, %s176
      %s178 = smul.u32 2, %s14
      %v179 = vld [vmem:[%s170] sm:$0xff]
      %v180 = vld [vmem:[%s170 + $0x8] sm:$0xff]
      %v181 = vld [vmem:[%s170 + $0x10] sm:$0xff]
      %v182 = vld [vmem:[%s170 + $0x18] sm:$0xff]
      %v183 = vld [vmem:[%s1] sm:$0xff]
      %v184 = vld [vmem:[%s1 + $0x8] sm:$0xff]
      %v185 = vld [vmem:[%s1 + $0x10] sm:$0xff]
      %v186 = vld [vmem:[%s1 + $0x18] sm:$0xff]
      %v187 = vld [vmem:[%s1 + $0x20] sm:$0xff]
      %v188 = vld [vmem:[%s1 + $0x28] sm:$0xff]
      %v189 = vld [vmem:[%s1 + $0x30] sm:$0xff]
      %v190 = vld [vmem:[%s1 + $0x38] sm:$0xff]
      %v191 = vld [vmem:[%s1 + $0x40] sm:$0xff]
      %v192 = vld [vmem:[%s1 + $0x48] sm:$0xff]
      %v193 = vld [vmem:[%s1 + $0x50] sm:$0xff]
      %v194 = vld [vmem:[%s1 + $0x58] sm:$0xff]
      %v195 = vld [vmem:[%s1 + $0x60] sm:$0xff]
      %v196 = vld [vmem:[%s1 + $0x68] sm:$0xff]
      %v197 = vld [vmem:[%s1 + $0x70] sm:$0xff]
      %v198 = vld [vmem:[%s1 + $0x78] sm:$0xff]
      %v199 = vld [vmem:[%s1 + $0x80] sm:$0xff]
      %v200 = vld [vmem:[%s1 + $0x88] sm:$0xff]
      %v201 = vld [vmem:[%s1 + $0x90] sm:$0xff]
      %v202 = vld [vmem:[%s1 + $0x98] sm:$0xff]
      %v203 = vld [vmem:[%s1 + $0xa0] sm:$0xff]
      %v204 = vld [vmem:[%s1 + $0xa8] sm:$0xff]
      %v205 = vld [vmem:[%s1 + $0xb0] sm:$0xff]
      %v206 = vld [vmem:[%s1 + $0xb8] sm:$0xff]
      %v207 = vld [vmem:[%s1 + $0xc0] sm:$0xff]
      %v208 = vld [vmem:[%s1 + $0xc8] sm:$0xff]
      %v209 = vld [vmem:[%s1 + $0xd0] sm:$0xff]
      %v210 = vld [vmem:[%s1 + $0xd8] sm:$0xff]
      %v211 = vld [vmem:[%s1 + $0xe0] sm:$0xff]
      %v212 = vld [vmem:[%s1 + $0xe8] sm:$0xff]
      %v213 = vld [vmem:[%s1 + $0xf0] sm:$0xff]
      %v214 = vld [vmem:[%s1 + $0xf8] sm:$0xff]
      %v215 = vld [vmem:[%s1 + $0x100] sm:$0xff]
      %v216 = vld [vmem:[%s1 + $0x108] sm:$0xff]
      %v217 = vld [vmem:[%s1 + $0x110] sm:$0xff]
      %v218 = vld [vmem:[%s1 + $0x118] sm:$0xff]
      %v219 = vld [vmem:[%s1 + $0x120] sm:$0xff]
      %v220 = vld [vmem:[%s1 + $0x128] sm:$0xff]
      %v221 = vld [vmem:[%s1 + $0x130] sm:$0xff]
      %v222 = vld [vmem:[%s1 + $0x138] sm:$0xff]
      %v223 = vld [vmem:[%s1 + $0x140] sm:$0xff]
      %v224 = vld [vmem:[%s1 + $0x148] sm:$0xff]
      %v225 = vld [vmem:[%s1 + $0x150] sm:$0xff]
      %v226 = vld [vmem:[%s1 + $0x158] sm:$0xff]
      %v227 = vld [vmem:[%s1 + $0x160] sm:$0xff]
      %v228 = vld [vmem:[%s1 + $0x168] sm:$0xff]
      %v229 = vld [vmem:[%s1 + $0x170] sm:$0xff]
      %v230 = vld [vmem:[%s1 + $0x178] sm:$0xff]
      %v231 = vld [vmem:[%s1 + $0x180] sm:$0xff]
      %v232 = vld [vmem:[%s1 + $0x188] sm:$0xff]
      %v233 = vld [vmem:[%s1 + $0x190] sm:$0xff]
      %v234 = vld [vmem:[%s1 + $0x198] sm:$0xff]
      %v235 = vld [vmem:[%s1 + $0x1a0] sm:$0xff]
      %v236 = vld [vmem:[%s1 + $0x1a8] sm:$0xff]
      %v237 = vld [vmem:[%s2] sm:$0x3]
      %v239 = vperm.slane %v237, 0
      %v240 = vperm.slane %v237, 1
      %vm243 = vcmask 719872
      %v245 = vsel %vm243, %v180, 0
      %v248 = vsel %vm243, %v182, 0
      %250 = vmatpush.msra.mxu0 %v213
      %251 = vmatpush.msra.mxu0 %v211
      %252 = vmatpush.msra.mxu0 %v209
      %253 = vmatpush.msra.mxu0 %v207
      %254 = vmatpush.msra.mxu0 %v205
      %255 = vmatpush.msra.mxu0 %v203
      %256 = vmatpush.msra.mxu0 %v201
      %257 = vmatpush.msra.mxu0 %v199
      %258 = vmatpush.msra.mxu0 %v197
      %259 = vmatpush.msra.mxu0 %v195
      %260 = vmatpush.msra.mxu0 %v193
      %261 = vmatpush.msra.mxu0 %v191
      %262 = vmatpush.msra.mxu0 %v189
      %263 = vmatpush.msra.mxu0 %v187
      %264 = vmatpush.msra.mxu0 %v185
      %265 = vmatpush.msra.mxu0 %v183
      %266 = vmatmul.f32.gmra.mxu0 %v179
      %v267 = vpop.f32.mrf.mxu0
      %v268 = vadd.f32 %v239, %v267
      %269 = vmatmul.f32.gmra.mxu0 %v181
      %v270 = vpop.f32.mrf.mxu0
      %v271 = vadd.f32 %v239, %v270
      %272 = vdwg.mxu0
      %273 = vmatpush.msra.mxu0 0.0
      %274 = vmatpush.msra.mxu0 0.0
      %275 = vmatpush.msra.mxu0 0.0
      %276 = vmatpush.msra.mxu0 0.0
      %277 = vmatpush.msra.mxu0 0.0
      %278 = vmatpush.msra.mxu0 %v235
      %279 = vmatpush.msra.mxu0 %v233
      %280 = vmatpush.msra.mxu0 %v231
      %281 = vmatpush.msra.mxu0 %v229
      %282 = vmatpush.msra.mxu0 %v227
      %283 = vmatpush.msra.mxu0 %v225
      %284 = vmatpush.msra.mxu0 %v223
      %285 = vmatpush.msra.mxu0 %v221
      %286 = vmatpush.msra.mxu0 %v219
      %287 = vmatpush.msra.mxu0 %v217
      %288 = vmatpush.msra.mxu0 %v215
      %289 = vmatmul.f32.gmra.mxu0 %v245
      %v290 = vpop.f32.mrf.mxu0
      %v291 = vadd.f32 %v268, %v290
      %292 = vmatmul.f32.gmra.mxu0 %v248
      %v293 = vpop.f32.mrf.mxu0
      %v294 = vadd.f32 %v271, %v293
      %295 = vdwg.mxu0
      %296 = vmatpush.msra.mxu0 %v214
      %297 = vmatpush.msra.mxu0 %v212
      %298 = vmatpush.msra.mxu0 %v210
      %299 = vmatpush.msra.mxu0 %v208
      %300 = vmatpush.msra.mxu0 %v206
      %301 = vmatpush.msra.mxu0 %v204
      %302 = vmatpush.msra.mxu0 %v202
      %303 = vmatpush.msra.mxu0 %v200
      %304 = vmatpush.msra.mxu0 %v198
      %305 = vmatpush.msra.mxu0 %v196
      %306 = vmatpush.msra.mxu0 %v194
      %307 = vmatpush.msra.mxu0 %v192
      %308 = vmatpush.msra.mxu0 %v190
      %309 = vmatpush.msra.mxu0 %v188
      %310 = vmatpush.msra.mxu0 %v186
      %311 = vmatpush.msra.mxu0 %v184
      %312 = vmatmul.f32.gmra.mxu0 %v179
      %v313 = vpop.f32.mrf.mxu0
      %v314 = vadd.f32 %v240, %v313
      %315 = vmatmul.f32.gmra.mxu0 %v181
      %v316 = vpop.f32.mrf.mxu0
      %v317 = vadd.f32 %v240, %v316
      %318 = vdwg.mxu0
      %319 = vmatpush.msra.mxu0 0.0
      %320 = vmatpush.msra.mxu0 0.0
      %321 = vmatpush.msra.mxu0 0.0
      %322 = vmatpush.msra.mxu0 0.0
      %323 = vmatpush.msra.mxu0 0.0
      %324 = vmatpush.msra.mxu0 %v236
      %325 = vmatpush.msra.mxu0 %v234
      %326 = vmatpush.msra.mxu0 %v232
      %327 = vmatpush.msra.mxu0 %v230
      %328 = vmatpush.msra.mxu0 %v228
      %329 = vmatpush.msra.mxu0 %v226
      %330 = vmatpush.msra.mxu0 %v224
      %331 = vmatpush.msra.mxu0 %v222
      %332 = vmatpush.msra.mxu0 %v220
      %333 = vmatpush.msra.mxu0 %v218
      %334 = vmatpush.msra.mxu0 %v216
      %335 = vmatmul.f32.gmra.mxu0 %v245
      %v336 = vpop.f32.mrf.mxu0
      %v337 = vadd.f32 %v314, %v336
      %338 = vmatmul.f32.gmra.mxu0 %v248
      %v339 = vpop.f32.mrf.mxu0
      %v340 = vadd.f32 %v317, %v339
      %341 = vdwg.mxu0
      %v342 = vxor.u32 %v291, 2147483648
      %v343 = vxor.u32 %v337, 2147483648
      %v344 = vxor.u32 %v294, 2147483648
      %v345 = vxor.u32 %v340, 2147483648
      %v346 = vmul.f32 %v342, 1.442695
      %v347 = vpow.pop %v346
      %v348 = vmul.f32 %v343, 1.442695
      %v349 = vpow.pop %v348
      %v350 = vmul.f32 %v344, 1.442695
      %v351 = vpow.pop %v350
      %v352 = vmul.f32 %v345, 1.442695
      %v353 = vpow.pop %v352
      %v354 = vadd.f32 %v347, 1.0
      %v355 = vadd.f32 %v349, 1.0
      %v356 = vadd.f32 %v351, 1.0
      %v357 = vadd.f32 %v353, 1.0
      %v358 = vrcp.pop %v354
      %v359 = vmul.f32 %v354, %v358
      %v360 = vsub.f32 1.0, %v359
      %v361 = vmul.f32 %v358, %v360
      %v362 = vadd.f32 %v358, %v361
      %vm363 = vweird.f32 %v354
      %vm364 = vweird.f32 %v358
      %vm365 = vmor %vm363, %vm364
      %v366 = vsel %vm365, %v358, %v362
      %v367 = vand.u32 2147483647, %v354
      %vm368 = vcmp.eq.f32.partialorder %v367, 8.507059e+37
      %v369 = vand.u32 %v354, 2147483648
      %v370 = vor.u32 1.1754944e-38, %v369
      %v371 = vsel %vm368, %v370, %v366
      %v372 = vmul.f32 1.0, %v371
      %v373 = vrcp.pop %v355
      %v374 = vmul.f32 %v355, %v373
      %v375 = vsub.f32 1.0, %v374
      %v376 = vmul.f32 %v373, %v375
      %v377 = vadd.f32 %v373, %v376
      %vm378 = vweird.f32 %v355
      %vm379 = vweird.f32 %v373
      %vm380 = vmor %vm378, %vm379
      %v381 = vsel %vm380, %v373, %v377
      %v382 = vand.u32 2147483647, %v355
      %vm383 = vcmp.eq.f32.partialorder %v382, 8.507059e+37
      %v384 = vand.u32 %v355, 2147483648
      %v385 = vor.u32 1.1754944e-38, %v384
      %v386 = vsel %vm383, %v385, %v381
      %v387 = vmul.f32 1.0, %v386
      %v388 = vrcp.pop %v356
      %v389 = vmul.f32 %v356, %v388
      %v390 = vsub.f32 1.0, %v389
      %v391 = vmul.f32 %v388, %v390
      %v392 = vadd.f32 %v388, %v391
      %vm393 = vweird.f32 %v356
      %vm394 = vweird.f32 %v388
      %vm395 = vmor %vm393, %vm394
      %v396 = vsel %vm395, %v388, %v392
      %v397 = vand.u32 2147483647, %v356
      %vm398 = vcmp.eq.f32.partialorder %v397, 8.507059e+37
      %v399 = vand.u32 %v356, 2147483648
      %v400 = vor.u32 1.1754944e-38, %v399
      %v401 = vsel %vm398, %v400, %v396
      %v402 = vmul.f32 1.0, %v401
      %v403 = vrcp.pop %v357
      %v404 = vmul.f32 %v357, %v403
      %v405 = vsub.f32 1.0, %v404
      %v406 = vmul.f32 %v403, %v405
      %v407 = vadd.f32 %v403, %v406
      %vm408 = vweird.f32 %v357
      %vm409 = vweird.f32 %v403
      %vm410 = vmor %vm408, %vm409
      %v411 = vsel %vm410, %v403, %v407
      %v412 = vand.u32 2147483647, %v357
      %vm413 = vcmp.eq.f32.partialorder %v412, 8.507059e+37
      %v414 = vand.u32 %v357, 2147483648
      %v415 = vor.u32 1.1754944e-38, %v414
      %v416 = vsel %vm413, %v415, %v411
      %v417 = vmul.f32 1.0, %v416
      %v418 = vmul.f32 %v291, %v372
      %v419 = vmul.f32 %v337, %v387
      %v420 = vmul.f32 %v294, %v402
      %v421 = vmul.f32 %v340, %v417
      %422 = vst [vmem:[%s177] sm:$0xff] %v418
      %423 = vst [vmem:[%s177 + $0x8] sm:$0xff] %v419
      %424 = vst [vmem:[%s177 + $0x10] sm:$0xff] %v420
      %425 = vst [vmem:[%s177 + $0x18] sm:$0xff] %v421
      %s426 = smul.u32 2, %s14
      %p427 = scmp.lt.s32.totalorder %s426, 3
      %s428 = scalar_select %p427, %s426, 3
      %s429 = smul.addr %s428, 2
      %s430 = smul.addr %s429, 8
      %s431 = scalar_lea.vmem %s3, %s430
      // Predicated region
      $region33: #{upsample_block.1} parent=31 // pred_check
        %p432 = pneg %p100
      $region34: #{upsample_block.1} parent=31 // pred_check_branch
        %434 = sbr.rel (%p432) target = $region36
      $region35: #{upsample_block.1} parent=31 // pred_region
        %s435 = smul.u32 2, %s14
      $region36: #{upsample_block.1} parent=31 // pred_fallthru
        _
    $region32: #{upsample_block.1} parent=5 // pred_fallthru
      _
    %p436 = scmp.le.s32.totalorder 2, %s9
    // Predicated region
    $region37: #{upsample_block.1} parent=5 // pred_check
      %p437 = pneg %p436
    $region38: #{upsample_block.1} parent=5 // pred_check_branch
      %439 = sbr.rel (%p437) target = $region40
    $region39: #{upsample_block.1} parent=5 // pred_region
      %s440 = ssub.s32 %s9, 2
      // Predicated region
      $region41: #{upsample_block.1} parent=39 // pred_check
        %p441 = pneg %p106
      $region42: #{upsample_block.1} parent=39 // pred_check_branch
        %443 = sbr.rel (%p441) target = $region44
      $region43: #{upsample_block.1} parent=39 // pred_region
        %s444 = smul.u32 2, %s15
        %p445 = scmp.lt.s32.totalorder %s444, 3
        %s446 = scalar_select %p445, %s444, 3
        %s447 = smul.addr %s446, 2
        %s448 = smul.addr %s447, 8
        %s449 = scalar_lea.vmem %s3, %s448
      $region44: #{upsample_block.1} parent=39 // pred_fallthru
        _
    $region40: #{upsample_block.1} parent=5 // pred_fallthru
      _
  $region6: #{upsample_block.1} parent=0 // loop_footer
    %s13 = sadd.s32 1, %s9
  $region7: #{upsample_block.1} parent=0 // loop_footer_branch
    %8 = sbr.rel target = $region3
  $region8: #{upsample_block.1} parent=0 // loop_exit
    _

</llo_original>
